<compile_context>
chip_gen: v7x
topology: tpu7x:2x2x1
jax: 0.10.0
libtpu: 0.0.40
codegen_flags: <defaults>
</compile_context>

<pallas_src>
import functools
import math

import jax
import jax.numpy as jnp
from jax.experimental import pallas as pl
from jax.experimental.pallas import tpu as pltpu


def _glu_kernel(a_ref, g_ref, o_ref):
    # Elementwise gating: out = a * sigmoid(g). Compute in f32, cast on store.
    a = a_ref[...].astype(jnp.float32)
    g = g_ref[...].astype(jnp.float32)
    # sigmoid(g) == 0.5 * tanh(0.5 * g) + 0.5  -> single EUP op, no divide chain.
    o_ref[...] = (a * (0.5 * jnp.tanh(0.5 * g) + 0.5)).astype(o_ref.dtype)


_MAX_LANES = 2048  # lane width for big tiles (multiple of 128)


def _per_block_bytes() -> int:
    """Per-stream block budget. 3 streams x 2 buffers must fit the scoped VMEM default."""
    try:
        kind = jax.devices()[0].device_kind.lower()
    except Exception:  # pragma: no cover - defensive only
        kind = ""
    if "v6" in kind or "v7" in kind or "7x" in kind:
        return 4 * 1024 * 1024   # 24 MiB double-buffered: fits 32 MiB scoped default
    return 2 * 1024 * 1024       # v5e & unknown: 12 MiB, fits the 16 MiB scoped default


def _pick_rows(total_rows: int, row_bytes: int, block_bytes: int) -> int:
    """Rows per block: full extent if it fits, else the largest multiple of 8 in budget."""
    budget = max(8, (block_bytes // max(row_bytes, 1)) // 8 * 8)
    return total_rows if total_rows <= budget else budget


@functools.partial(jax.jit, static_argnames=("dim",))
def glu(x: jax.Array, *, dim: int = 1) -> jax.Array:
    """GLU along `dim`: split x into (outputs, gate), return outputs * sigmoid(gate)."""
    ndim = x.ndim
    dim = dim % ndim
    c = x.shape[dim]
    if c % 2 != 0:
        raise ValueError(f"GLU split dim {dim} must have even size, got {c}")
    half = c // 2
    outer = int(math.prod(x.shape[:dim]))          # = 1 if dim == 0
    inner = int(math.prod(x.shape[dim + 1:]))      # = 1 if dim is last
    m = half * inner                               # contiguous elems per (outer row, half)
    out_full_shape = x.shape[:dim] + (half,) + x.shape[dim + 1:]
    if outer == 0 or m == 0:
        return jnp.zeros(out_full_shape, x.dtype)

    itemsize = jnp.dtype(x.dtype).itemsize
    block_bytes = _per_block_bytes()
    params = pltpu.CompilerParams(dimension_semantics=("parallel", "parallel"))

    if outer >= 8 or m % 128 != 0:
        # ---- Path A: tile (outer, m) directly; half is picked on the (squeezed)
        # middle axis so no divisibility of m by the lane tile is required. ----
        # TODO(synk): outer < 8 combined with m % 128 != 0 still gets thin sublane
        # tiles here (correct, just not vreg-dense).
        x3 = x.reshape(outer, 2, m)                          # free reshape, no copy
        tile_m = m if m <= _MAX_LANES else _MAX_LANES        # full dim or 2048-lane tiles
        row_bytes = ((tile_m + 127) // 128) * 128 * itemsize  # VMEM pads lanes to 128
        tile_o = _pick_rows(outer, row_bytes, block_bytes)
        n_o, n_m = pl.cdiv(outer, tile_o), pl.cdiv(m, tile_m)
        blk_in, blk_out = (tile_o, None, tile_m), (tile_o, tile_m)   # None = squeezed half axis
        if n_m >= n_o:   # longest grid axis first -> balanced split across v7x's 2 TCs
            grid = (n_m, n_o)
            a_spec = pl.BlockSpec(blk_in, lambda jm, io: (io, 0, jm))
            g_spec = pl.BlockSpec(blk_in, lambda jm, io: (io, 1, jm))
            o_spec = pl.BlockSpec(blk_out, lambda jm, io: (io, jm))
        else:
            grid = (n_o, n_m)
            a_spec = pl.BlockSpec(blk_in, lambda io, jm: (io, 0, jm))
            g_spec = pl.BlockSpec(blk_in, lambda io, jm: (io, 1, jm))
            o_spec = pl.BlockSpec(blk_out, lambda io, jm: (io, jm))
        out2 = pl.pallas_call(
            _glu_kernel,
            out_shape=jax.ShapeDtypeStruct((outer, m), x.dtype),
            grid=grid,
            in_specs=[a_spec, g_spec],
            out_specs=o_spec,
            compiler_params=params,
        )(x3, x3)
        return out2.reshape(out_full_shape)

    # ---- Path B: outer < 8 and m lane-aligned -> fold m into (rows, lanes) so the
    # sublane axis is filled even with tiny batch dims. ----
    lanes = 128
    for cand in (2048, 1024, 512, 256):
        if m % cand == 0 and m // cand >= 8:
            lanes = cand
            break
    rows = m // lanes
    x4 = x.reshape(outer, 2, rows, lanes)                    # free reshape, no copy
    tile_r = _pick_rows(rows, lanes * itemsize, block_bytes)
    n_r = pl.cdiv(rows, tile_r)
    blk_in, blk_out = (None, None, tile_r, lanes), (None, tile_r, lanes)
    if n_r >= outer:
        grid = (n_r, outer)
        a_spec = pl.BlockSpec(blk_in, lambda jr, io: (io, 0, jr, 0))
        g_spec = pl.BlockSpec(blk_in, lambda jr, io: (io, 1, jr, 0))
        o_spec = pl.BlockSpec(blk_out, lambda jr, io: (io, jr, 0))
    else:
        grid = (outer, n_r)
        a_spec = pl.BlockSpec(blk_in, lambda io, jr: (io, 0, jr, 0))
        g_spec = pl.BlockSpec(blk_in, lambda io, jr: (io, 1, jr, 0))
        o_spec = pl.BlockSpec(blk_out, lambda io, jr: (io, jr, 0))
    out3 = pl.pallas_call(
        _glu_kernel,
        out_shape=jax.ShapeDtypeStruct((outer, rows, lanes), x.dtype),
        grid=grid,
        in_specs=[a_spec, g_spec],
        out_specs=o_spec,
        compiler_params=params,
    )(x4, x4)
    return out3.reshape(out_full_shape)


def _glu_ref(x: jax.Array, dim: int = 1) -> jax.Array:
    dim = dim % x.ndim
    half = x.shape[dim] // 2
    a = jax.lax.slice_in_dim(x, 0, half, axis=dim)
    g = jax.lax.slice_in_dim(x, half, 2 * half, axis=dim)
    return a * jax.nn.sigmoid(g)


if __name__ == "__main__":
    key = jax.random.PRNGKey(0)
    k1, k2, k3, k4 = jax.random.split(key, 4)

    # Main case implied by the module (NCHW, channel GLU): batch=2, C=4->2, 16x16.
    x = jax.random.normal(k1, (2, 4, 16, 16), dtype=jnp.float32)
    out = jax.block_until_ready(glu(x, dim=1))
    ref = _glu_ref(x, dim=1)
    assert out.shape == (2, 2, 16, 16), out.shape
    assert jnp.allclose(out, ref, atol=1e-5, rtol=1e-5), "f32 NCHW mismatch"

    # Large-outer / multi-lane-block path (Path A), last-dim GLU.
    x = jax.random.normal(k2, (16, 8192), dtype=jnp.float32)
    out = jax.block_until_ready(glu(x, dim=-1))
    assert jnp.allclose(out, _glu_ref(x, dim=-1), atol=1e-5, rtol=1e-5), "f32 2D mismatch"

    # bf16 input.
    x = jax.random.normal(k3, (16, 64), dtype=jnp.bfloat16)
    out = jax.block_until_ready(glu(x, dim=-1))
    ref = _glu_ref(x.astype(jnp.float32), dim=-1)
    assert jnp.allclose(out.astype(jnp.float32), ref, atol=2e-2, rtol=2e-2), "bf16 mismatch"

    # m not a multiple of 128 (previously the copy-heavy fallback; now copy-free).
    x = jax.random.normal(k4, (8, 6, 10), dtype=jnp.float32)
    out = jax.block_until_ready(glu(x, dim=1))
    assert out.shape == (8, 3, 10), out.shape
    assert jnp.allclose(out, _glu_ref(x, dim=1), atol=1e-5, rtol=1e-5), "misaligned-m mismatch"

    print("KERNEL_OK")
</pallas_src>

<mosaic_0001>
module attributes {stable_mosaic.version = 11 : i64} {
  func.func @_glu_kernel(%arg0: i32, %arg1: i32, %arg2: memref<1x1x4x128xf32, #tpu.memory_space<vmem>>, %arg3: memref<1x1x4x128xf32, #tpu.memory_space<vmem>>, %arg4: memref<1x4x128xf32, #tpu.memory_space<vmem>>) attributes {dimension_semantics = [#tpu.dimension_semantics<parallel>, #tpu.dimension_semantics<parallel>], iteration_bounds = array<i64: 2, 1>, scalar_prefetch = 0 : i64, scratch_operands = 0 : i64, tpu.core_type = #tpu.core_type<tc>, window_params = [{transform_indices = @transform_0, window_bounds = array<i64: 1, 1, 4, 128>}, {transform_indices = @transform_1, window_bounds = array<i64: 1, 1, 4, 128>}, {transform_indices = @transform_2, window_bounds = array<i64: 1, 4, 128>}]} {
    %c0 = arith.constant 0 : index
    %c0_0 = arith.constant 0 : index
    %c0_1 = arith.constant 0 : index
    %c0_2 = arith.constant 0 : index
    %0 = vector.load %arg2[%c0, %c0_0, %c0_1, %c0_2] : memref<1x1x4x128xf32, #tpu.memory_space<vmem>>, vector<1x1x4x128xf32>
    %1 = vector.shape_cast %0 : vector<1x1x4x128xf32> to vector<4x128xf32>
    %c0_3 = arith.constant 0 : index
    %c0_4 = arith.constant 0 : index
    %c0_5 = arith.constant 0 : index
    %c0_6 = arith.constant 0 : index
    %2 = vector.load %arg3[%c0_3, %c0_4, %c0_5, %c0_6] : memref<1x1x4x128xf32, #tpu.memory_space<vmem>>, vector<1x1x4x128xf32>
    %3 = vector.shape_cast %2 : vector<1x1x4x128xf32> to vector<4x128xf32>
    %cst = arith.constant 5.000000e-01 : f32
    %4 = vector.broadcast %cst : f32 to vector<4x128xf32>
    %5 = arith.mulf %4, %3 : vector<4x128xf32>
    %6 = math.tanh %5 : vector<4x128xf32>
    %cst_7 = arith.constant 5.000000e-01 : f32
    %7 = vector.broadcast %cst_7 : f32 to vector<4x128xf32>
    %8 = arith.mulf %7, %6 : vector<4x128xf32>
    %cst_8 = arith.constant 5.000000e-01 : f32
    %9 = vector.broadcast %cst_8 : f32 to vector<4x128xf32>
    %10 = arith.addf %8, %9 : vector<4x128xf32>
    %11 = arith.mulf %1, %10 : vector<4x128xf32>
    %c0_9 = arith.constant 0 : index
    %c0_10 = arith.constant 0 : index
    %c0_11 = arith.constant 0 : index
    %12 = vector.load %arg4[%c0_9, %c0_10, %c0_11] : memref<1x4x128xf32, #tpu.memory_space<vmem>>, vector<1x4x128xf32>
    %13 = vector.shape_cast %12 : vector<1x4x128xf32> to vector<4x128xf32>
    %14 = vector.shape_cast %11 : vector<4x128xf32> to vector<1x4x128xf32>
    tpu.vector_store %arg4[%c0_9, %c0_10, %c0_11], %14 {strides = array<i32>} : memref<1x4x128xf32, #tpu.memory_space<vmem>>, vector<1x4x128xf32>,
    return
  }
  func.func @transform_0(%arg0: i32, %arg1: i32) -> (i32, i32, i32, i32) {
    %c0_i32 = arith.constant 0 : i32
    %c0_i32_0 = arith.constant 0 : i32
    %c0_i32_1 = arith.constant 0 : i32
    return %arg0, %c0_i32, %arg1, %c0_i32_0 : i32, i32, i32, i32
  }
  func.func @transform_1(%arg0: i32, %arg1: i32) -> (i32, i32, i32, i32) {
    %c1_i32 = arith.constant 1 : i32
    %c0_i32 = arith.constant 0 : i32
    %c0_i32_0 = arith.constant 0 : i32
    return %arg0, %c1_i32, %arg1, %c0_i32 : i32, i32, i32, i32
  }
  func.func @transform_2(%arg0: i32, %arg1: i32) -> (i32, i32, i32) {
    %c0_i32 = arith.constant 0 : i32
    %c0_i32_0 = arith.constant 0 : i32
    return %arg0, %arg1, %c0_i32 : i32, i32, i32
  }
}

</mosaic_0001>

<llo_original>
// kernel: glu.1
$region0: #{glu.1}
  #allocation0 [shape = 'u32[]', space=smem, size = 0x4, offset = 0x4, fixed_abs, tag = 'smem constant byte address 0x4 - core index']
  #allocation1 [shape = 'u32[144,128]{1,0:T(1,128)}', space=vmem, size = 0x12000, scoped, tag = 'internal scratch']
  %s0 = inlined_call_operand.vmem [shape: f32[2,2,4,128], index: 0, kind: input, shape index: {}, may-alias: {0,1}]
  %s1 = inlined_call_operand.vmem [shape: f32[2,2,4,128], index: 1, kind: input, shape index: {}, may-alias: {0,1}]
  %s2 = inlined_call_operand.vmem [shape: f32[2,4,128], index: 2, kind: output, shape index: {}]
  %s3 = sld [smem:[#allocation0]]
  $region41: #{glu.1} parent=0
    _
  %s5 = ssub.s32 1, %s3
  %s6 = scalar_select 0, %s5, %s3
  loop: start=0, step=1, limit=4
  $region2: #{glu.1} parent=0 // loop_pre_header
    _
  $region3: #{glu.1} parent=0 // loop_header
    %s8 = sphi 0, %s12
    %p9 = scmp.ge.s32.totalorder %s8, 4
    %s15 = sphi 0, %s27
    %s16 = sphi 0, %s23
    %s17 = sphi 0, %s15
    %s18 = sphi 0, %s16
    %s19 = sphi 0, %s17
    %s20 = sphi 0, %s18
    %s32 = sphi 0, %s34
    %s35 = sphi 0, %s32
    %s36 = sphi 0, %s35
    %s52 = sphi 0, %s36
    %s60 = sphi 0, %s62
    %s63 = sphi 0, %s60
    %s64 = sphi 0, %s63
    %s80 = sphi 0, %s64
    %s88 = sphi 0, %s90
    %s91 = sphi 0, %s88
    %s92 = sphi 0, %s91
    %s108 = sphi 0, %s92
  $region4: #{glu.1} parent=0 // loop_header_branch
    %11 = sbr.rel (%p9) target = $region8
  $region5: #{glu.1} parent=0 // loop_body
    %s13 = ssub.s32 %s8, 1
    %s14 = ssub.s32 %s8, 2
    %s21 = sadd.s32 1, %s16
    %p22 = scmp.ge.s32.totalorder %s21, 1
    %s23 = scalar_select %p22, 0, %s21
    %s24 = sadd.s32 1, %s15
    %s25 = scalar_select %p22, %s24, %s15
    %p26 = scmp.ge.s32.totalorder %s25, 2
    %s27 = scalar_select %p26, 0, %s25
    %s28 = ssub.s32 %s15, %s27
    %s29 = ssub.s32 %s16, %s23
    %s30 = sor.u32 %s28, %s29
    %p31 = scmp.eq.s32.totalorder %s30, 0
    %s33 = sadd.s32 %s32, 1
    %s34 = scalar_select %p31, %s32, %s33
    %p37 = pneg %p31
    %p38 = scmp.eq.s32.totalorder %s8, 1
    %p39 = por %p37, %p38
    %p40 = scmp.ne.s32.totalorder %s32, %s35
    %p41 = scmp.eq.s32.totalorder %s8, 0
    %p42 = por %p40, %p41
    %p43 = scmp.ne.s32.totalorder %s32, %s35
    %p44 = scmp.eq.s32.totalorder %s13, 1
    %p45 = por %p43, %p44
    %p46 = scmp.ne.s32.totalorder %s35, %s36
    %p47 = scmp.eq.s32.totalorder %s13, 0
    %p48 = por %p46, %p47
    %p49 = scmp.ne.s32.totalorder %s35, %s36
    %p50 = scmp.eq.s32.totalorder %s14, 1
    %p51 = por %p49, %p50
    %p53 = scmp.ne.s32.totalorder %s36, %s52
    %p54 = scmp.eq.s32.totalorder %s14, 0
    %p55 = por %p53, %p54
    %s56 = ssub.s32 %s15, %s27
    %s57 = ssub.s32 %s16, %s23
    %s58 = sor.u32 %s56, %s57
    %p59 = scmp.eq.s32.totalorder %s58, 0
    %s61 = sadd.s32 %s60, 1
    %s62 = scalar_select %p59, %s60, %s61
    %p65 = pneg %p59
    %p66 = scmp.eq.s32.totalorder %s8, 1
    %p67 = por %p65, %p66
    %p68 = scmp.ne.s32.totalorder %s60, %s63
    %p69 = scmp.eq.s32.totalorder %s8, 0
    %p70 = por %p68, %p69
    %p71 = scmp.ne.s32.totalorder %s60, %s63
    %p72 = scmp.eq.s32.totalorder %s13, 1
    %p73 = por %p71, %p72
    %p74 = scmp.ne.s32.totalorder %s63, %s64
    %p75 = scmp.eq.s32.totalorder %s13, 0
    %p76 = por %p74, %p75
    %p77 = scmp.ne.s32.totalorder %s63, %s64
    %p78 = scmp.eq.s32.totalorder %s14, 1
    %p79 = por %p77, %p78
    %p81 = scmp.ne.s32.totalorder %s64, %s80
    %p82 = scmp.eq.s32.totalorder %s14, 0
    %p83 = por %p81, %p82
    %s84 = ssub.s32 %s15, %s27
    %s85 = ssub.s32 %s16, %s23
    %s86 = sor.u32 %s84, %s85
    %p87 = scmp.eq.s32.totalorder %s86, 0
    %s89 = sadd.s32 %s88, 1
    %s90 = scalar_select %p87, %s88, %s89
    %p93 = pneg %p87
    %p94 = scmp.eq.s32.totalorder %s8, 1
    %p95 = por %p93, %p94
    %p96 = scmp.ne.s32.totalorder %s88, %s91
    %p97 = scmp.eq.s32.totalorder %s8, 0
    %p98 = por %p96, %p97
    %p99 = scmp.ne.s32.totalorder %s88, %s91
    %p100 = scmp.eq.s32.totalorder %s13, 1
    %p101 = por %p99, %p100
    %p102 = scmp.ne.s32.totalorder %s91, %s92
    %p103 = scmp.eq.s32.totalorder %s13, 0
    %p104 = por %p102, %p103
    %p105 = scmp.ne.s32.totalorder %s91, %s92
    %p106 = scmp.eq.s32.totalorder %s14, 1
    %p107 = por %p105, %p106
    %p109 = scmp.ne.s32.totalorder %s92, %s108
    %p110 = scmp.eq.s32.totalorder %s14, 0
    %p111 = por %p109, %p110
    %p112 = scmp.le.s32.totalorder 1, %s8
    %p113 = scmp.lt.s32.totalorder %s8, 3
    %p114 = pnand %p112, %p113
    %p115 = pneg %p114
    // Predicated region
    $region9: #{glu.1} parent=5 // pred_check
      _
    $region10: #{glu.1} parent=5 // pred_check_branch
      %117 = sbr.rel (%p114) target = $region12
    $region11: #{glu.1} parent=5 // pred_region
      %s118 = ssub.s32 %s8, 1
    $region12: #{glu.1} parent=5 // pred_fallthru
      _
    %p119 = scmp.lt.s32.totalorder %s8, 2
    // Predicated region
    $region13: #{glu.1} parent=5 // pred_check
      %p120 = pneg %p119
    $region14: #{glu.1} parent=5 // pred_check_branch
      %122 = sbr.rel (%p120) target = $region16
    $region15: #{glu.1} parent=5 // pred_region
      // Predicated region
      $region17: #{glu.1} parent=15 // pred_check
        %p123 = pneg %p42
      $region18: #{glu.1} parent=15 // pred_check_branch
        %125 = sbr.rel (%p123) target = $region20
      $region19: #{glu.1} parent=15 // pred_region
        %p126 = scmp.lt.s32.totalorder %s15, 1
        %s127 = scalar_select %p126, %s15, 1
        %p128 = scmp.lt.s32.totalorder %s16, 0
        %s129 = scalar_select %p128, %s16, 0
        %s130 = smul.addr %s127, 2
        %s131 = sadd.s32 %s129, %s130
        %s132 = smul.addr %s131, 4
        %s133 = scalar_lea.vmem %s0, %s132
      $region20: #{glu.1} parent=15 // pred_fallthru
        _
      // Predicated region
      $region21: #{glu.1} parent=15 // pred_check
        %p134 = pneg %p70
      $region22: #{glu.1} parent=15 // pred_check_branch
        %136 = sbr.rel (%p134) target = $region24
      $region23: #{glu.1} parent=15 // pred_region
        %p137 = scmp.lt.s32.totalorder %s15, 1
        %s138 = scalar_select %p137, %s15, 1
        %p139 = scmp.lt.s32.totalorder %s16, 0
        %s140 = scalar_select %p139, %s16, 0
        %s141 = sadd.s32 %s140, 1
        %s142 = smul.addr %s138, 2
        %s143 = sadd.s32 %s141, %s142
        %s144 = smul.addr %s143, 4
        %s145 = scalar_lea.vmem %s1, %s144
      $region24: #{glu.1} parent=15 // pred_fallthru
        _
    $region16: #{glu.1} parent=5 // pred_fallthru
      _
    %p146 = scmp.le.s32.totalorder 1, %s8
    %p147 = scmp.lt.s32.totalorder %s8, 3
    %p148 = pnand %p146, %p147
    %p149 = pneg %p148
    // Predicated region
    $region25: #{glu.1} parent=5 // pred_check
      _
    $region26: #{glu.1} parent=5 // pred_check_branch
      %151 = sbr.rel (%p148) target = $region28
    $region27: #{glu.1} parent=5 // pred_region
      %s152 = ssub.s32 %s8, 1
      %p153 = scmp.lt.s32.totalorder %s17, 1
      %s154 = scalar_select %p153, %s17, 1
      %p155 = scmp.lt.s32.totalorder %s18, 0
      %s156 = scalar_select %p155, %s18, 0
      %s157 = smul.addr %s154, 2
      %s158 = sadd.s32 %s156, %s157
      %s159 = smul.addr %s158, 4
      %s160 = scalar_lea.vmem %s0, %s159
      %p161 = pneg %p48
      %p162 = pneg %p45
      %p163 = scmp.lt.s32.totalorder %s17, 1
      %s164 = scalar_select %p163, %s17, 1
      %p165 = scmp.lt.s32.totalorder %s18, 0
      %s166 = scalar_select %p165, %s18, 0
      %s167 = sadd.s32 %s166, 1
      %s168 = smul.addr %s164, 2
      %s169 = sadd.s32 %s167, %s168
      %s170 = smul.addr %s169, 4
      %s171 = scalar_lea.vmem %s1, %s170
      %p172 = pneg %p76
      %p173 = pneg %p73
      %p174 = pneg %p104
      %p175 = pneg %p101
      %p176 = scmp.lt.s32.totalorder %s17, 1
      %s177 = scalar_select %p176, %s17, 1
      %p178 = scmp.lt.s32.totalorder %s18, 0
      %s179 = scalar_select %p178, %s18, 0
      %s180 = sadd.s32 %s179, %s177
      %s181 = smul.addr %s180, 4
      %s182 = scalar_lea.vmem %s2, %s181
      %p183 = scmp.lt.s32.totalorder %s17, 1
      %s184 = scalar_select %p183, %s17, 1
      %p185 = scmp.lt.s32.totalorder %s18, 0
      %s186 = scalar_select %p185, %s18, 0
      %s187 = smul.addr %s184, 2
      %s188 = sadd.s32 %s186, %s187
      %s189 = smul.addr %s188, 4
      %s190 = scalar_lea.vmem %s0, %s189
      %p191 = scmp.lt.s32.totalorder %s17, 1
      %s192 = scalar_select %p191, %s17, 1
      %p193 = scmp.lt.s32.totalorder %s18, 0
      %s194 = scalar_select %p193, %s18, 0
      %s195 = sadd.s32 %s194, 1
      %s196 = smul.addr %s192, 2
      %s197 = sadd.s32 %s195, %s196
      %s198 = smul.addr %s197, 4
      %s199 = scalar_lea.vmem %s1, %s198
      %p200 = scmp.lt.s32.totalorder %s17, 1
      %s201 = scalar_select %p200, %s17, 1
      %p202 = scmp.lt.s32.totalorder %s18, 0
      %s203 = scalar_select %p202, %s18, 0
      %s204 = sadd.s32 %s203, %s201
      %s205 = smul.addr %s204, 4
      %s206 = scalar_lea.vmem %s2, %s205
      %v207 = vld [vmem:[%s190] sm:$0xf]
      %v208 = vld [vmem:[%s199] sm:$0xf]
      %v209 = vmul.f32 %v208, 0.5
      %v210 = vtanh.pop %v209
      %v211 = vmul.f32 %v210, 0.5
      %v212 = vadd.f32 %v211, 0.5
      %v213 = vmul.f32 %v207, %v212
      %214 = vst [vmem:[%s206] sm:$0xf] %v213
      %p215 = scmp.lt.s32.totalorder %s17, 1
      %s216 = scalar_select %p215, %s17, 1
      %p217 = scmp.lt.s32.totalorder %s18, 0
      %s218 = scalar_select %p217, %s18, 0
      %s219 = sadd.s32 %s218, %s216
      %s220 = smul.addr %s219, 4
      %s221 = scalar_lea.vmem %s2, %s220
      // Predicated region
      $region29: #{glu.1} parent=27 // pred_check
        %p222 = pneg %p101
      $region30: #{glu.1} parent=27 // pred_check_branch
        %224 = sbr.rel (%p222) target = $region32
      $region31: #{glu.1} parent=27 // pred_region
        _
      $region32: #{glu.1} parent=27 // pred_fallthru
        _
    $region28: #{glu.1} parent=5 // pred_fallthru
      _
    %p225 = scmp.le.s32.totalorder 2, %s8
    // Predicated region
    $region33: #{glu.1} parent=5 // pred_check
      %p226 = pneg %p225
    $region34: #{glu.1} parent=5 // pred_check_branch
      %228 = sbr.rel (%p226) target = $region36
    $region35: #{glu.1} parent=5 // pred_region
      %s229 = ssub.s32 %s8, 2
      // Predicated region
      $region37: #{glu.1} parent=35 // pred_check
        %p230 = pneg %p107
      $region38: #{glu.1} parent=35 // pred_check_branch
        %232 = sbr.rel (%p230) target = $region40
      $region39: #{glu.1} parent=35 // pred_region
        %p233 = scmp.lt.s32.totalorder %s19, 1
        %s234 = scalar_select %p233, %s19, 1
        %p235 = scmp.lt.s32.totalorder %s20, 0
        %s236 = scalar_select %p235, %s20, 0
        %s237 = sadd.s32 %s236, %s234
        %s238 = smul.addr %s237, 4
        %s239 = scalar_lea.vmem %s2, %s238
      $region40: #{glu.1} parent=35 // pred_fallthru
        _
    $region36: #{glu.1} parent=5 // pred_fallthru
      _
  $region6: #{glu.1} parent=0 // loop_footer
    %s12 = sadd.s32 1, %s8
  $region7: #{glu.1} parent=0 // loop_footer_branch
    %7 = sbr.rel target = $region3
  $region8: #{glu.1} parent=0 // loop_exit
    _

</llo_original>
